<compile_context>
chip_gen: v5e
topology: v5e:2x2
jax: 0.10.0
libtpu: 0.0.40
codegen_flags: <defaults>
</compile_context>

<pallas_src>
import math

import jax
import jax.numpy as jnp
from jax.experimental import pallas as pl
from jax.experimental.pallas import tpu as pltpu

_HALF_LOG_2PI = 0.5 * math.log(2.0 * math.pi)


def _actor_kernel(x_ref, w1_ref, b1_ref, w2_ref, b2_ref, w3_ref, b3_ref,
                  logstd_ref, noise_ref, a_ref, logp_ref):
    # Transposed layout: batch rides the lane (last) axis everywhere.
    x = x_ref[...]                                    # (n_states, TB)
    noise = noise_ref[...]                            # (n_actions, TB)

    # 3-layer MLP on the MXU; weights/biases are VMEM-resident across steps.
    h1 = jnp.dot(w1_ref[...], x, preferred_element_type=jnp.float32) + b1_ref[...]
    h1 = jnp.maximum(h1, 0.0)                         # (hidden, TB)
    h2 = jnp.dot(w2_ref[...], h1, preferred_element_type=jnp.float32) + b2_ref[...]
    h2 = jnp.maximum(h2, 0.0)                         # (hidden, TB)
    x3 = jnp.dot(w3_ref[...], h2, preferred_element_type=jnp.float32) + b3_ref[...]

    # Policy head: mean = tanh(x3), std = exp(logstd).
    mean = jnp.tanh(x3)                               # (n_actions, TB)
    logstd = logstd_ref[...]                          # (n_actions, 1)
    std = jnp.exp(logstd)

    # Reparameterized sample of Normal(mean, std); lane-dense unmasked store.
    a = mean + std * noise                            # (n_actions, TB)
    a_ref[...] = a

    # log_prob summed over actions.  (a - mean)/std == noise exactly, so
    #   logp = -0.5*sum(noise^2) + (-sum(logstd) - n_actions*0.5*log(2*pi)).
    # The sum over actions is a sublane reduce that lands directly in the
    # (1, TB) lane-dense output layout -- no relayout needed.
    n_actions = noise.shape[0]
    const = -jnp.sum(logstd) - n_actions * _HALF_LOG_2PI          # batch-independent
    logp_ref[...] = -0.5 * jnp.sum(noise * noise, axis=0, keepdims=True) + const


def _round_up(v, m):
    return ((v + m - 1) // m) * m


def actor_forward(x, params, noise, *, tile_b=2048):
    """Actor forward pass.

    x:      (B, n_states) float32
    params: (w1, b1, w2, b2, w3, b3, logstd) with w_i stored (out, in) and
            b_i / logstd stored (out, 1).
    noise:  (B, n_actions) standard-normal draws (reparameterization noise).

    Returns (action, log_prob): action (B, n_actions), log_prob (B,).
    """
    w1, b1, w2, b2, w3, b3, logstd = params
    B, n_states = x.shape
    hidden = w1.shape[0]
    n_actions = w3.shape[0]

    # Effective batch tile: multiple of 128 (lane-dense stores), large enough to
    # amortize per-step pipeline overhead, small enough that the grid has >=2
    # steps whenever B allows (megacore sharding on v7x).  Tiny B pads only to 128.
    tb = max(128, min(_round_up(tile_b, 128), _round_up(pl.cdiv(B, 2), 128)))
    n_tiles = pl.cdiv(B, tb)
    b_pad = n_tiles * tb

    # One-time wrapper-side transpose so batch is on the lane axis in-kernel.
    x_t = x.T                                         # (n_states, B)
    noise_t = noise.T                                 # (n_actions, B)
    if b_pad != B:
        pad = b_pad - B
        x_t = jnp.pad(x_t, ((0, 0), (0, pad)))
        noise_t = jnp.pad(noise_t, ((0, 0), (0, pad)))

    def resident(shape):
        # Constant index_map: block stays resident in VMEM, no re-DMA per step.
        return pl.BlockSpec(shape, lambda i: (0, 0))

    a_t, logp = pl.pallas_call(
        _actor_kernel,
        out_shape=(
            jax.ShapeDtypeStruct((n_actions, b_pad), jnp.float32),
            jax.ShapeDtypeStruct((1, b_pad), jnp.float32),
        ),
        grid=(n_tiles,),
        in_specs=[
            pl.BlockSpec((n_states, tb), lambda i: (0, i)),       # x^T (tiled)
            resident((hidden, n_states)),                         # w1
            resident((hidden, 1)),                                # b1
            resident((hidden, hidden)),                           # w2
            resident((hidden, 1)),                                # b2
            resident((n_actions, hidden)),                        # w3
            resident((n_actions, 1)),                             # b3
            resident((n_actions, 1)),                             # logstd
            pl.BlockSpec((n_actions, tb), lambda i: (0, i)),      # noise^T (tiled)
        ],
        out_specs=(
            pl.BlockSpec((n_actions, tb), lambda i: (0, i)),      # action^T (lane-dense)
            pl.BlockSpec((1, tb), lambda i: (0, i)),              # logp (lane-dense)
        ),
        # Working set is a few MiB -> default scoped VMEM is plenty on all gens;
        # do NOT pin vmem_limit_bytes at the full 64 MiB of a v7x core.
        compiler_params=pltpu.CompilerParams(
            dimension_semantics=("parallel",),
        ),
    )(x_t, w1, b1, w2, b2, w3, b3, logstd, noise_t)

    return a_t.T[:B], logp[0, :B]


def init_actor_params(key, n_states, n_actions, hidden_dim):
    """Init mimicking PyTorch nn.Linear default (uniform +/- 1/sqrt(fan_in)).

    Weights stored (out, in); biases / logstd stored (out, 1)."""
    ks = jax.random.split(key, 6)

    def linear(kw, kb, fan_in, fan_out):
        bound = 1.0 / math.sqrt(fan_in)
        w = jax.random.uniform(kw, (fan_out, fan_in), jnp.float32, -bound, bound)
        b = jax.random.uniform(kb, (fan_out, 1), jnp.float32, -bound, bound)
        return w, b

    w1, b1 = linear(ks[0], ks[1], n_states, hidden_dim)
    w2, b2 = linear(ks[2], ks[3], hidden_dim, hidden_dim)
    w3, b3 = linear(ks[4], ks[5], hidden_dim, n_actions)
    logstd = jnp.zeros((n_actions, 1), jnp.float32)   # nn.Parameter(torch.zeros(1, n_actions))
    return (w1, b1, w2, b2, w3, b3, logstd)


def actor_forward_ref(x, params, noise):
    """Pure-JAX reference matching the torch module's math exactly."""
    w1, b1, w2, b2, w3, b3, logstd = params
    h1 = jnp.maximum(x @ w1.T + b1.T, 0.0)
    h2 = jnp.maximum(h1 @ w2.T + b2.T, 0.0)
    mean = jnp.tanh(h2 @ w3.T + b3.T)
    logstd_row = logstd.T                              # (1, n_actions)
    std = jnp.exp(logstd_row)
    a = mean + std * noise
    logp = -0.5 * ((a - mean) / std) ** 2 - logstd_row - _HALF_LOG_2PI
    return a, jnp.sum(logp, axis=1)


if __name__ == "__main__":
    n_states, n_actions, hidden_dim = 16, 8, 32

    key = jax.random.PRNGKey(0)
    k_x, k_p, k_n, k_x2, k_n2 = jax.random.split(key, 5)
    params = init_actor_params(k_p, n_states, n_actions, hidden_dim)

    # Small batch (pads only to one 128-wide tile).
    batch = 2
    x = jax.random.normal(k_x, (batch, n_states), jnp.float32)
    noise = jax.random.normal(k_n, (batch, n_actions), jnp.float32)
    a, logp = actor_forward(x, params, noise)
    jax.block_until_ready((a, logp))
    a_ref, logp_ref = actor_forward_ref(x, params, noise)
    assert a.shape == (batch, n_actions) and logp.shape == (batch,)
    assert jnp.allclose(a, a_ref, atol=1e-5, rtol=1e-5)
    assert jnp.allclose(logp, logp_ref, atol=1e-5, rtol=1e-5)

    # Larger batch exercises the multi-step (megacore-shardable) grid path.
    batch2 = 384
    x2 = jax.random.normal(k_x2, (batch2, n_states), jnp.float32)
    noise2 = jax.random.normal(k_n2, (batch2, n_actions), jnp.float32)
    a2, logp2 = actor_forward(x2, params, noise2)
    jax.block_until_ready((a2, logp2))
    a2_ref, logp2_ref = actor_forward_ref(x2, params, noise2)
    assert jnp.allclose(a2, a2_ref, atol=1e-5, rtol=1e-5)
    assert jnp.allclose(logp2, logp2_ref, atol=1e-5, rtol=1e-5)

    print("KERNEL_OK")
</pallas_src>

<mosaic_0001>
module attributes {stable_mosaic.version = 11 : i64} {
  func.func @_actor_kernel(%arg0: i32, %arg1: memref<16x128xf32, #tpu.memory_space<vmem>>, %arg2: memref<32x16xf32, #tpu.memory_space<vmem>>, %arg3: memref<32x1xf32, #tpu.memory_space<vmem>>, %arg4: memref<32x32xf32, #tpu.memory_space<vmem>>, %arg5: memref<32x1xf32, #tpu.memory_space<vmem>>, %arg6: memref<8x32xf32, #tpu.memory_space<vmem>>, %arg7: memref<8x1xf32, #tpu.memory_space<vmem>>, %arg8: memref<8x1xf32, #tpu.memory_space<vmem>>, %arg9: memref<8x128xf32, #tpu.memory_space<vmem>>, %arg10: memref<8x128xf32, #tpu.memory_space<vmem>>, %arg11: memref<1x128xf32, #tpu.memory_space<vmem>>) attributes {dimension_semantics = [#tpu.dimension_semantics<parallel>], iteration_bounds = array<i64: 1>, scalar_prefetch = 0 : i64, scratch_operands = 0 : i64, tpu.core_type = #tpu.core_type<tc>, window_params = [{transform_indices = @transform_0, window_bounds = array<i64: 16, 128>}, {pipeline_mode = #tpu.pipeline_mode<synchronous>, transform_indices = @transform_1, window_bounds = array<i64: 32, 16>}, {pipeline_mode = #tpu.pipeline_mode<synchronous>, transform_indices = @transform_2, window_bounds = array<i64: 32, 1>}, {pipeline_mode = #tpu.pipeline_mode<synchronous>, transform_indices = @transform_3, window_bounds = array<i64: 32, 32>}, {pipeline_mode = #tpu.pipeline_mode<synchronous>, transform_indices = @transform_4, window_bounds = array<i64: 32, 1>}, {pipeline_mode = #tpu.pipeline_mode<synchronous>, transform_indices = @transform_5, window_bounds = array<i64: 8, 32>}, {pipeline_mode = #tpu.pipeline_mode<synchronous>, transform_indices = @transform_6, window_bounds = array<i64: 8, 1>}, {pipeline_mode = #tpu.pipeline_mode<synchronous>, transform_indices = @transform_7, window_bounds = array<i64: 8, 1>}, {transform_indices = @transform_8, window_bounds = array<i64: 8, 128>}, {transform_indices = @transform_9, window_bounds = array<i64: 8, 128>}, {transform_indices = @transform_10, window_bounds = array<i64: 1, 128>}]} {
    %c0 = arith.constant 0 : index
    %c0_0 = arith.constant 0 : index
    %0 = vector.load %arg1[%c0, %c0_0] : memref<16x128xf32, #tpu.memory_space<vmem>>, vector<16x128xf32>
    %c0_1 = arith.constant 0 : index
    %c0_2 = arith.constant 0 : index
    %1 = vector.load %arg9[%c0_1, %c0_2] : memref<8x128xf32, #tpu.memory_space<vmem>>, vector<8x128xf32>
    %c0_3 = arith.constant 0 : index
    %c0_4 = arith.constant 0 : index
    %2 = vector.load %arg2[%c0_3, %c0_4] : memref<32x16xf32, #tpu.memory_space<vmem>>, vector<32x16xf32>
    %cst = arith.constant dense<0.000000e+00> : vector<32x128xf32>
    %3 = tpu.matmul %2, %0, %cst {dimension_numbers = #tpu.dot_dimension_numbers<[1], [0], [0], [1], [0, 0, 1, 1], [], []>} : vector<32x16xf32>, vector<16x128xf32>, vector<32x128xf32> -> vector<32x128xf32>
    %c0_5 = arith.constant 0 : index
    %c0_6 = arith.constant 0 : index
    %4 = vector.load %arg3[%c0_5, %c0_6] : memref<32x1xf32, #tpu.memory_space<vmem>>, vector<32x1xf32>
    %5 = vector.broadcast %4 : vector<32x1xf32> to vector<32x128xf32>
    %6 = arith.addf %3, %5 : vector<32x128xf32>
    %cst_7 = arith.constant 0.000000e+00 : f32
    %7 = vector.broadcast %cst_7 : f32 to vector<32x128xf32>
    %8 = arith.maximumf %6, %7 : vector<32x128xf32>
    %c0_8 = arith.constant 0 : index
    %c0_9 = arith.constant 0 : index
    %9 = vector.load %arg4[%c0_8, %c0_9] : memref<32x32xf32, #tpu.memory_space<vmem>>, vector<32x32xf32>
    %cst_10 = arith.constant dense<0.000000e+00> : vector<32x128xf32>
    %10 = tpu.matmul %9, %8, %cst_10 {dimension_numbers = #tpu.dot_dimension_numbers<[1], [0], [0], [1], [0, 0, 1, 1], [], []>} : vector<32x32xf32>, vector<32x128xf32>, vector<32x128xf32> -> vector<32x128xf32>
    %c0_11 = arith.constant 0 : index
    %c0_12 = arith.constant 0 : index
    %11 = vector.load %arg5[%c0_11, %c0_12] : memref<32x1xf32, #tpu.memory_space<vmem>>, vector<32x1xf32>
    %12 = vector.broadcast %11 : vector<32x1xf32> to vector<32x128xf32>
    %13 = arith.addf %10, %12 : vector<32x128xf32>
    %cst_13 = arith.constant 0.000000e+00 : f32
    %14 = vector.broadcast %cst_13 : f32 to vector<32x128xf32>
    %15 = arith.maximumf %13, %14 : vector<32x128xf32>
    %c0_14 = arith.constant 0 : index
    %c0_15 = arith.constant 0 : index
    %16 = vector.load %arg6[%c0_14, %c0_15] : memref<8x32xf32, #tpu.memory_space<vmem>>, vector<8x32xf32>
    %cst_16 = arith.constant dense<0.000000e+00> : vector<8x128xf32>
    %17 = tpu.matmul %16, %15, %cst_16 {dimension_numbers = #tpu.dot_dimension_numbers<[1], [0], [0], [1], [0, 0, 1, 1], [], []>} : vector<8x32xf32>, vector<32x128xf32>, vector<8x128xf32> -> vector<8x128xf32>
    %c0_17 = arith.constant 0 : index
    %c0_18 = arith.constant 0 : index
    %18 = vector.load %arg7[%c0_17, %c0_18] : memref<8x1xf32, #tpu.memory_space<vmem>>, vector<8x1xf32>
    %19 = vector.broadcast %18 : vector<8x1xf32> to vector<8x128xf32>
    %20 = arith.addf %17, %19 : vector<8x128xf32>
    %21 = math.tanh %20 : vector<8x128xf32>
    %c0_19 = arith.constant 0 : index
    %c0_20 = arith.constant 0 : index
    %22 = vector.load %arg8[%c0_19, %c0_20] : memref<8x1xf32, #tpu.memory_space<vmem>>, vector<8x1xf32>
    %23 = math.exp %22 : vector<8x1xf32>
    %24 = vector.broadcast %23 : vector<8x1xf32> to vector<8x128xf32>
    %25 = arith.mulf %24, %1 : vector<8x128xf32>
    %26 = arith.addf %21, %25 : vector<8x128xf32>
    %c0_21 = arith.constant 0 : index
    %c0_22 = arith.constant 0 : index
    %27 = vector.load %arg10[%c0_21, %c0_22] : memref<8x128xf32, #tpu.memory_space<vmem>>, vector<8x128xf32>
    tpu.vector_store %arg10[%c0_21, %c0_22], %26 {strides = array<i32>} : memref<8x128xf32, #tpu.memory_space<vmem>>, vector<8x128xf32>,
    %28 = vector.shape_cast %22 : vector<8x1xf32> to vector<1x8x1xf32>
    %cst_23 = arith.constant dense<0.000000e+00> : vector<1xf32>
    %29 = vector.multi_reduction <add>, %28, %cst_23 [1, 2] : vector<1x8x1xf32> to vector<1xf32>
    %30 = vector.shape_cast %29 : vector<1xf32> to vector<1x1x1xf32>
    %31 = vector.extract %30[0, 0, 0] : f32 from vector<1x1x1xf32>
    %cst_24 = arith.constant 0.000000e+00 : f32
    %32 = arith.subf %cst_24, %31 : f32
    %cst_25 = arith.constant 7.35150814 : f32
    %33 = arith.subf %32, %cst_25 : f32
    %34 = arith.mulf %1, %1 : vector<8x128xf32>
    %cst_26 = arith.constant dense<0.000000e+00> : vector<128xf32>
    %35 = vector.multi_reduction <add>, %34, %cst_26 [0] : vector<8x128xf32> to vector<128xf32>
    %36 = vector.shape_cast %35 : vector<128xf32> to vector<1x128xf32>
    %cst_27 = arith.constant -5.000000e-01 : f32
    %37 = vector.broadcast %cst_27 : f32 to vector<1x128xf32>
    %38 = arith.mulf %37, %36 : vector<1x128xf32>
    %39 = vector.broadcast %33 : f32 to vector<1x128xf32>
    %40 = arith.addf %38, %39 : vector<1x128xf32>
    %c0_28 = arith.constant 0 : index
    %c0_29 = arith.constant 0 : index
    %41 = vector.load %arg11[%c0_28, %c0_29] : memref<1x128xf32, #tpu.memory_space<vmem>>, vector<1x128xf32>
    tpu.vector_store %arg11[%c0_28, %c0_29], %40 {strides = array<i32>} : memref<1x128xf32, #tpu.memory_space<vmem>>, vector<1x128xf32>,
    return
  }
  func.func @transform_0(%arg0: i32) -> (i32, i32) {
    %c0_i32 = arith.constant 0 : i32
    %c0_i32_0 = arith.constant 0 : i32
    return %c0_i32, %arg0 : i32, i32
  }
  func.func @transform_1(%arg0: i32) -> (i32, i32) {
    %c0_i32 = arith.constant 0 : i32
    %c0_i32_0 = arith.constant 0 : i32
    %c0_i32_1 = arith.constant 0 : i32
    return %c0_i32, %c0_i32_0 : i32, i32
  }
  func.func @transform_2(%arg0: i32) -> (i32, i32) {
    %c0_i32 = arith.constant 0 : i32
    %c0_i32_0 = arith.constant 0 : i32
    %c0_i32_1 = arith.constant 0 : i32
    return %c0_i32, %c0_i32_0 : i32, i32
  }
  func.func @transform_3(%arg0: i32) -> (i32, i32) {
    %c0_i32 = arith.constant 0 : i32
    %c0_i32_0 = arith.constant 0 : i32
    %c0_i32_1 = arith.constant 0 : i32
    return %c0_i32, %c0_i32_0 : i32, i32
  }
  func.func @transform_4(%arg0: i32) -> (i32, i32) {
    %c0_i32 = arith.constant 0 : i32
    %c0_i32_0 = arith.constant 0 : i32
    %c0_i32_1 = arith.constant 0 : i32
    return %c0_i32, %c0_i32_0 : i32, i32
  }
  func.func @transform_5(%arg0: i32) -> (i32, i32) {
    %c0_i32 = arith.constant 0 : i32
    %c0_i32_0 = arith.constant 0 : i32
    %c0_i32_1 = arith.constant 0 : i32
    return %c0_i32, %c0_i32_0 : i32, i32
  }
  func.func @transform_6(%arg0: i32) -> (i32, i32) {
    %c0_i32 = arith.constant 0 : i32
    %c0_i32_0 = arith.constant 0 : i32
    %c0_i32_1 = arith.constant 0 : i32
    return %c0_i32, %c0_i32_0 : i32, i32
  }
  func.func @transform_7(%arg0: i32) -> (i32, i32) {
    %c0_i32 = arith.constant 0 : i32
    %c0_i32_0 = arith.constant 0 : i32
    %c0_i32_1 = arith.constant 0 : i32
    return %c0_i32, %c0_i32_0 : i32, i32
  }
  func.func @transform_8(%arg0: i32) -> (i32, i32) {
    %c0_i32 = arith.constant 0 : i32
    %c0_i32_0 = arith.constant 0 : i32
    return %c0_i32, %arg0 : i32, i32
  }
  func.func @transform_9(%arg0: i32) -> (i32, i32) {
    %c0_i32 = arith.constant 0 : i32
    %c0_i32_0 = arith.constant 0 : i32
    return %c0_i32, %arg0 : i32, i32
  }
  func.func @transform_10(%arg0: i32) -> (i32, i32) {
    %c0_i32 = arith.constant 0 : i32
    %c0_i32_0 = arith.constant 0 : i32
    return %c0_i32, %arg0 : i32, i32
  }
}

</mosaic_0001>

<llo_original>
// kernel: tpu_custom_call.1
$region0: #{tpu_custom_call.1}
  #allocation0 [shape = 'u32[]', space=smem, size = 0x4, offset = 0x4, fixed_abs, tag = 'smem constant byte address 0x4 - core index']
  #allocation1 [shape = 'u32[72,128]{1,0:T(1,128)}', space=vmem, size = 0x9000, scoped, tag = 'internal scratch']
  %s0 = inlined_call_operand.vmem [shape: f32[16,128], index: 0, kind: input, shape index: {}]
  %s1 = inlined_call_operand.vmem [shape: f32[32,16], index: 1, kind: input, shape index: {}]
  %s2 = inlined_call_operand.vmem [shape: f32[32,1], index: 2, kind: input, shape index: {}]
  %s3 = inlined_call_operand.vmem [shape: f32[32,32], index: 3, kind: input, shape index: {}]
  %s4 = inlined_call_operand.vmem [shape: f32[32,1], index: 4, kind: input, shape index: {}]
  %s5 = inlined_call_operand.vmem [shape: f32[8,32], index: 5, kind: input, shape index: {}]
  %s6 = inlined_call_operand.vmem [shape: f32[8,1], index: 6, kind: input, shape index: {}]
  %s7 = inlined_call_operand.vmem [shape: f32[8,1], index: 7, kind: input, shape index: {}]
  %s8 = inlined_call_operand.vmem [shape: f32[8,128], index: 8, kind: input, shape index: {}]
  %s9 = inlined_call_operand.hbm [shape: f32[8,128], index: 9, kind: output, shape index: {0}]
  %s10 = inlined_call_operand.hbm [shape: f32[1,128], index: 10, kind: output, shape index: {1}]
  %11 = xla_tuple %s9, %s10
  %s12 = sld [smem:[#allocation0]]
  $region54: #{tpu_custom_call.1} parent=0
    _
  %s14 = ssub.s32 1, %s12
  %s15 = scalar_select 0, %s14, %s12
  $region1: #{tpu_custom_call.1} parent=0
    #allocation2 [shape = 'u8[4096]{0}', space=vmem, size = 0x1000, scoped, tag = 'output window, operand 0, single buffered']
    #allocation3 [shape = 's32[1]{0}', space=sflag, size = 0x4, scoped, tag = 'scoped memory for tpu_custom_call.1']
    #allocation4 [shape = 'u8[512]{0}', space=vmem, size = 0x400, scoped, tag = 'output window, operand 1, single buffered']
    #allocation5 [shape = 's32[1]{0}', space=sflag, size = 0x4, scoped, tag = 'scoped memory for tpu_custom_call.1']
    %16 = vsyncpa [#allocation3], 0
    %17 = vsyncpa [#allocation5], 0
    // Predicated region
    $region2: #{tpu_custom_call.1} parent=1 // pred_check
      _
    $region3: #{tpu_custom_call.1} parent=1 // pred_check_branch
      %19 = sbr.rel (0) target = $region5
    $region4: #{tpu_custom_call.1} parent=1 // pred_region
      _
    $region5: #{tpu_custom_call.1} parent=1 // pred_fallthru
      _
    // Predicated region
    $region6: #{tpu_custom_call.1} parent=1 // pred_check
      _
    $region7: #{tpu_custom_call.1} parent=1 // pred_check_branch
      %21 = sbr.rel (0) target = $region9
    $region8: #{tpu_custom_call.1} parent=1 // pred_region
      _
    $region9: #{tpu_custom_call.1} parent=1 // pred_fallthru
      _
    // Predicated region
    $region10: #{tpu_custom_call.1} parent=1 // pred_check
      _
    $region11: #{tpu_custom_call.1} parent=1 // pred_check_branch
      %23 = sbr.rel (0) target = $region13
    $region12: #{tpu_custom_call.1} parent=1 // pred_region
      _
    $region13: #{tpu_custom_call.1} parent=1 // pred_fallthru
      _
    // Predicated region
    $region14: #{tpu_custom_call.1} parent=1 // pred_check
      _
    $region15: #{tpu_custom_call.1} parent=1 // pred_check_branch
      %25 = sbr.rel (0) target = $region17
    $region16: #{tpu_custom_call.1} parent=1 // pred_region
      _
    $region17: #{tpu_custom_call.1} parent=1 // pred_fallthru
      _
    // Predicated region
    $region18: #{tpu_custom_call.1} parent=1 // pred_check
      _
    $region19: #{tpu_custom_call.1} parent=1 // pred_check_branch
      %27 = sbr.rel (0) target = $region21
    $region20: #{tpu_custom_call.1} parent=1 // pred_region
      _
    $region21: #{tpu_custom_call.1} parent=1 // pred_fallthru
      _
    // Predicated region
    $region22: #{tpu_custom_call.1} parent=1 // pred_check
      _
    $region23: #{tpu_custom_call.1} parent=1 // pred_check_branch
      %29 = sbr.rel (0) target = $region25
    $region24: #{tpu_custom_call.1} parent=1 // pred_region
      _
    $region25: #{tpu_custom_call.1} parent=1 // pred_fallthru
      _
    // Predicated region
    $region26: #{tpu_custom_call.1} parent=1 // pred_check
      _
    $region27: #{tpu_custom_call.1} parent=1 // pred_check_branch
      %31 = sbr.rel (0) target = $region29
    $region28: #{tpu_custom_call.1} parent=1 // pred_region
      _
    $region29: #{tpu_custom_call.1} parent=1 // pred_fallthru
      _
    // Predicated region
    $region30: #{tpu_custom_call.1} parent=1 // pred_check
      _
    $region31: #{tpu_custom_call.1} parent=1 // pred_check_branch
      %33 = sbr.rel (0) target = $region33
    $region32: #{tpu_custom_call.1} parent=1 // pred_region
      _
    $region33: #{tpu_custom_call.1} parent=1 // pred_fallthru
      _
    // Predicated region
    $region34: #{tpu_custom_call.1} parent=1 // pred_check
      _
    $region35: #{tpu_custom_call.1} parent=1 // pred_check_branch
      %35 = sbr.rel (0) target = $region37
    $region36: #{tpu_custom_call.1} parent=1 // pred_region
      _
    $region37: #{tpu_custom_call.1} parent=1 // pred_fallthru
      _
    %v36 = vld [vmem:[%s0] sm:$0xff]
    %v37 = vld [vmem:[%s0 + $0x8] sm:$0xff]
    %v38 = vld [vmem:[%s8] sm:$0xff]
    %v39 = vld [vmem:[%s1] sm:$0xff]
    %v40 = vld [vmem:[%s1 + $0x8] sm:$0xff]
    %v41 = vld [vmem:[%s1 + $0x10] sm:$0xff]
    %v42 = vld [vmem:[%s1 + $0x18] sm:$0xff]
    %v43 = vld [vmem:[%s2] sm:$0xff]
    %v44 = vld [vmem:[%s2 + $0x8] sm:$0xff]
    %v45 = vld [vmem:[%s2 + $0x10] sm:$0xff]
    %v46 = vld [vmem:[%s2 + $0x18] sm:$0xff]
    %48 = vset.pattern.permute.xlu0 0
    %49 = vperm.xlu0 %48, %v43
    %v50 = vpop.permute.xlu0 %49
    %53 = vset.pattern.permute.xlu0 0
    %54 = vperm.xlu0 %53, %v44
    %v55 = vpop.permute.xlu0 %54
    %58 = vset.pattern.permute.xlu0 0
    %59 = vperm.xlu0 %58, %v45
    %v60 = vpop.permute.xlu0 %59
    %63 = vset.pattern.permute.xlu0 0
    %64 = vperm.xlu0 %63, %v46
    %v65 = vpop.permute.xlu0 %64
    %vm67 = vcmask 130048
    %v69 = vsel %vm67, %v39, 0
    %v72 = vsel %vm67, %v40, 0
    %v75 = vsel %vm67, %v41, 0
    %v78 = vsel %vm67, %v42, 0
    %80 = vmatpush.msra.mxu0 0.0
    %81 = vmatpush.msra.mxu0 0.0
    %82 = vmatpush.msra.mxu0 0.0
    %83 = vmatpush.msra.mxu0 0.0
    %84 = vmatpush.msra.mxu0 0.0
    %85 = vmatpush.msra.mxu0 0.0
    %86 = vmatpush.msra.mxu0 0.0
    %87 = vmatpush.msra.mxu0 0.0
    %88 = vmatpush.msra.mxu0 0.0
    %89 = vmatpush.msra.mxu0 0.0
    %90 = vmatpush.msra.mxu0 0.0
    %91 = vmatpush.msra.mxu0 0.0
    %92 = vmatpush.msra.mxu0 0.0
    %93 = vmatpush.msra.mxu0 0.0
    %94 = vmatpush.msra.mxu0 %v37
    %95 = vmatpush.msra.mxu0 %v36
    %96 = vmatmul.f32.gmra.mxu0 %v69
    %v97 = vpop.f32.mrf.mxu0
    %v98 = vadd.f32 %v50, %v97
    %99 = vmatmul.f32.gmra.mxu0 %v72
    %v100 = vpop.f32.mrf.mxu0
    %v101 = vadd.f32 %v55, %v100
    %102 = vmatmul.f32.gmra.mxu0 %v75
    %v103 = vpop.f32.mrf.mxu0
    %v104 = vadd.f32 %v60, %v103
    %105 = vmatmul.f32.gmra.mxu0 %v78
    %v106 = vpop.f32.mrf.mxu0
    %v107 = vadd.f32 %v65, %v106
    %108 = vdwg.mxu0
    %v109 = vmax.f32 %v98, 0.0
    %v110 = vmax.f32 %v101, 0.0
    %v111 = vmax.f32 %v104, 0.0
    %v112 = vmax.f32 %v107, 0.0
    %v113 = vld [vmem:[%s3] sm:$0xff]
    %v114 = vld [vmem:[%s3 + $0x8] sm:$0xff]
    %v115 = vld [vmem:[%s3 + $0x10] sm:$0xff]
    %v116 = vld [vmem:[%s3 + $0x18] sm:$0xff]
    %v117 = vld [vmem:[%s4] sm:$0xff]
    %v118 = vld [vmem:[%s4 + $0x8] sm:$0xff]
    %v119 = vld [vmem:[%s4 + $0x10] sm:$0xff]
    %v120 = vld [vmem:[%s4 + $0x18] sm:$0xff]
    %122 = vset.pattern.permute.xlu0 0
    %123 = vperm.xlu0 %122, %v117
    %v124 = vpop.permute.xlu0 %123
    %127 = vset.pattern.permute.xlu0 0
    %128 = vperm.xlu0 %127, %v118
    %v129 = vpop.permute.xlu0 %128
    %132 = vset.pattern.permute.xlu0 0
    %133 = vperm.xlu0 %132, %v119
    %v134 = vpop.permute.xlu0 %133
    %137 = vset.pattern.permute.xlu0 0
    %138 = vperm.xlu0 %137, %v120
    %v139 = vpop.permute.xlu0 %138
    %vm141 = vcmask 261120
    %v143 = vsel %vm141, %v113, 0
    %v146 = vsel %vm141, %v114, 0
    %v149 = vsel %vm141, %v115, 0
    %v152 = vsel %vm141, %v116, 0
    %154 = vmatpush.msra.mxu0 0.0
    %155 = vmatpush.msra.mxu0 0.0
    %156 = vmatpush.msra.mxu0 0.0
    %157 = vmatpush.msra.mxu0 0.0
    %158 = vmatpush.msra.mxu0 0.0
    %159 = vmatpush.msra.mxu0 0.0
    %160 = vmatpush.msra.mxu0 0.0
    %161 = vmatpush.msra.mxu0 0.0
    %162 = vmatpush.msra.mxu0 0.0
    %163 = vmatpush.msra.mxu0 0.0
    %164 = vmatpush.msra.mxu0 0.0
    %165 = vmatpush.msra.mxu0 0.0
    %166 = vmatpush.msra.mxu0 %v112
    %167 = vmatpush.msra.mxu0 %v111
    %168 = vmatpush.msra.mxu0 %v110
    %169 = vmatpush.msra.mxu0 %v109
    %170 = vmatmul.f32.gmra.mxu0 %v143
    %v171 = vpop.f32.mrf.mxu0
    %v172 = vadd.f32 %v124, %v171
    %173 = vmatmul.f32.gmra.mxu0 %v146
    %v174 = vpop.f32.mrf.mxu0
    %v175 = vadd.f32 %v129, %v174
    %176 = vmatmul.f32.gmra.mxu0 %v149
    %v177 = vpop.f32.mrf.mxu0
    %v178 = vadd.f32 %v134, %v177
    %179 = vmatmul.f32.gmra.mxu0 %v152
    %v180 = vpop.f32.mrf.mxu0
    %v181 = vadd.f32 %v139, %v180
    %182 = vdwg.mxu0
    %v183 = vmax.f32 %v172, 0.0
    %v184 = vmax.f32 %v175, 0.0
    %v185 = vmax.f32 %v178, 0.0
    %v186 = vmax.f32 %v181, 0.0
    %v187 = vld [vmem:[%s5] sm:$0xff]
    %v188 = vld [vmem:[%s6] sm:$0xff]
    %190 = vset.pattern.permute.xlu0 0
    %191 = vperm.xlu0 %190, %v188
    %v192 = vpop.permute.xlu0 %191
    %v195 = vsel %vm141, %v187, 0
    %197 = vmatpush.msra.mxu0 0.0
    %198 = vmatpush.msra.mxu0 0.0
    %199 = vmatpush.msra.mxu0 0.0
    %200 = vmatpush.msra.mxu0 0.0
    %201 = vmatpush.msra.mxu0 0.0
    %202 = vmatpush.msra.mxu0 0.0
    %203 = vmatpush.msra.mxu0 0.0
    %204 = vmatpush.msra.mxu0 0.0
    %205 = vmatpush.msra.mxu0 0.0
    %206 = vmatpush.msra.mxu0 0.0
    %207 = vmatpush.msra.mxu0 0.0
    %208 = vmatpush.msra.mxu0 0.0
    %209 = vmatpush.msra.mxu0 %v186
    %210 = vmatpush.msra.mxu0 %v185
    %211 = vmatpush.msra.mxu0 %v184
    %212 = vmatpush.msra.mxu0 %v183
    %213 = vmatmul.f32.gmra.mxu0 %v195
    %v214 = vpop.f32.mrf.mxu0
    %v215 = vadd.f32 %v192, %v214
    %216 = vdwg.mxu0
    %v217 = vtanh.pop %v215
    %v218 = vld [vmem:[%s7] sm:$0xff]
    %v219 = vmul.f32 %v218, 1.442695
    %v220 = vpow.pop %v219
    %222 = vset.pattern.permute.xlu0 0
    %223 = vperm.xlu0 %222, %v220
    %v224 = vpop.permute.xlu0 %223
    %v226 = vmul.f32 %v224, %v38
    %v227 = vadd.f32 %v217, %v226
    %228 = vst [vmem:[#allocation2] sm:$0xff] %v227
    %vm229 = vcmask 7168
    %v230 = vsel %vm229, %v218, 0.0
    %231 = vadd.xlane.f32.xlu0 %v230
    %v232 = vpop.xlane.xlu0 %231
    %v233 = vrot.slane %v232, 4
    %v234 = vadd.f32 %v232, %v233
    %v235 = vrot.slane %v234, 2
    %v236 = vadd.f32 %v234, %v235
    %v237 = vrot.slane %v236, 1
    %v238 = vadd.f32 %v236, %v237
    %s239 = vtos %v238
    %s240 = ssub.f32 0.0, %s239
    %s241 = ssub.f32 %s240, 7.351508
    %v242 = vmul.f32 %v38, %v38
    %v243 = vrot.slane %v242, 4
    %v244 = vadd.f32 %v242, %v243
    %v245 = vrot.slane %v244, 2
    %v246 = vadd.f32 %v244, %v245
    %v247 = vrot.slane %v246, 1
    %v248 = vadd.f32 %v246, %v247
    %v249 = vmul.f32 %v248, -0.5
    %v250 = vstv %s241
    %v251 = vadd.f32 %v249, %v250
    %252 = vst [vmem:[#allocation4] sm:$0x1] %v251
    // Predicated region
    $region38: #{tpu_custom_call.1} parent=1 // pred_check
      _
    $region39: #{tpu_custom_call.1} parent=1 // pred_check_branch
      %254 = sbr.rel (0) target = $region41
    $region40: #{tpu_custom_call.1} parent=1 // pred_region
      %256 = vsyncadd [#allocation3], 0
      %s258 = sshll.u32 [#allocation2], 4
      %s259 = int_to_ptr.vmem [resolvable:$true] %s258
      %s260 = sshll.u32 %s9, 4
      %s261 = int_to_ptr.hbm [resolvable:$true] %s260
      %263 = dma.vmem_to_hbm [thread:$0]  %s259, 128, %s261, [#allocation3]
    $region41: #{tpu_custom_call.1} parent=1 // pred_fallthru
      _
    // Predicated region
    $region42: #{tpu_custom_call.1} parent=1 // pred_check
      _
    $region43: #{tpu_custom_call.1} parent=1 // pred_check_branch
      %265 = sbr.rel (0) target = $region45
    $region44: #{tpu_custom_call.1} parent=1 // pred_region
      %267 = vsyncadd [#allocation5], 0
      %s269 = sshll.u32 [#allocation4], 4
      %s270 = int_to_ptr.vmem [resolvable:$true] %s269
      %s271 = sshll.u32 %s10, 4
      %s272 = int_to_ptr.hbm [resolvable:$true] %s271
      %274 = dma.vmem_to_hbm [thread:$0]  %s270, 16, %s272, [#allocation5]
    $region45: #{tpu_custom_call.1} parent=1 // pred_fallthru
      _
    // Predicated region
    $region46: #{tpu_custom_call.1} parent=1 // pred_check
      _
    $region47: #{tpu_custom_call.1} parent=1 // pred_check_branch
      %276 = sbr.rel (0) target = $region49
    $region48: #{tpu_custom_call.1} parent=1 // pred_region
      %278 = dma.done [#allocation3], 128
    $region49: #{tpu_custom_call.1} parent=1 // pred_fallthru
      _
    // Predicated region
    $region50: #{tpu_custom_call.1} parent=1 // pred_check
      _
    $region51: #{tpu_custom_call.1} parent=1 // pred_check_branch
      %280 = sbr.rel (0) target = $region53
    $region52: #{tpu_custom_call.1} parent=1 // pred_region
      %282 = dma.done [#allocation5], 16
    $region53: #{tpu_custom_call.1} parent=1 // pred_fallthru
      _
    %283 = vsyncpa [#allocation3], 1
    %284 = vsyncpa [#allocation5], 1

</llo_original>
